<compile_context>
chip_gen: v7x
topology: tpu7x:2x2x1
jax: 0.10.0
libtpu: 0.0.40
codegen_flags: <defaults>
</compile_context>

<pallas_src>
import functools

import jax
import jax.numpy as jnp
from jax import lax
from jax.experimental import pallas as pl
from jax.experimental.pallas import tpu as pltpu


def _round_up(n, m):
    return ((n + m - 1) // m) * m


def _model_kernel(x_ref, w1_ref, b1_ref, w2_ref, b2_ref, w3_ref,
                  proj_ref, feat_ref, *, inv_s, fc1_dim, out_dim):
    # ---- synthetic backbone: global average pool (f32) + linear ----
    x = x_ref[...]                                        # (TB, C, S) f32 — read once from HBM
    pooled = jnp.sum(x, axis=-1) * inv_s                  # (TB, C) f32 pooling (XLU reduce)
    feat = jnp.dot(pooled, w1_ref[...],
                   preferred_element_type=jnp.float32)    # (TB, F1P) f32; tiny K=C contraction
    feat = jnp.maximum(feat + b1_ref[...], 0.0)           # inplace-ReLU semantics on features
    feat_ref[...] = feat[:, :fc1_dim].astype(feat_ref.dtype)   # bf16, unpadded lanes

    # ---- fc2 + ReLU ----
    h = jnp.dot(feat.astype(jnp.bfloat16), w2_ref[...],
                preferred_element_type=jnp.float32)       # (TB, PDP)
    h = jnp.maximum(h + b2_ref[...], 0.0)

    # ---- fc3 (no bias) + L2 normalize over dim=1 ----
    z = jnp.dot(h.astype(jnp.bfloat16), w3_ref[...],
                preferred_element_type=jnp.float32)       # (TB, ODP); padded cols are exact zeros
    sumsq = jnp.sum(z * z, axis=1, keepdims=True)         # padded zeros add nothing
    # 1 / max(||z||, 1e-12)  ==  rsqrt(max(sumsq, 1e-24));  rsqrt goes to the EUP.
    inv = lax.rsqrt(jnp.maximum(sumsq, 1e-24))
    proj_ref[...] = (z * inv)[:, :out_dim].astype(proj_ref.dtype)   # f32, unpadded lanes


def contrastive_model_forward(x_nchw, params):
    """x_nchw: (B, C, H, W) float32.  Returns (proj (B, proj_out) f32, features (B, fc1) bf16)."""
    B, C, H, W = x_nchw.shape
    S = H * W
    w1, b1, w2, b2, w3 = (params["w0"], params["b0"],
                          params["w2"], params["b2"], params["w3"])
    fc1_dim = w1.shape[1]
    proj_dim = w2.shape[1]
    out_dim = w3.shape[1]

    # ---- padded feature dims for the in-kernel matmul chain (weights only) ----
    F1P = _round_up(fc1_dim, 128)
    PDP = _round_up(proj_dim, 128)
    ODP = _round_up(out_dim, 128)

    def pad2(a, r, c):
        return jnp.pad(a, ((0, r - a.shape[0]), (0, c - a.shape[1])))

    # Backbone linear stays f32 (tiny) so pool+fc1 match the f32 reference; fc2/fc3 bf16.
    w1p = pad2(w1, C, F1P).astype(jnp.float32)            # (C, F1P)
    b1p = pad2(b1.reshape(1, -1), 1, F1P).astype(jnp.float32)
    w2p = pad2(w2, F1P, PDP).astype(jnp.bfloat16)
    b2p = pad2(b2.reshape(1, -1), 1, PDP).astype(jnp.float32)
    w3p = pad2(w3, PDP, ODP).astype(jnp.bfloat16)         # padded columns are exact zeros

    weight_bytes = (C * F1P + F1P + PDP) * 4 + (F1P * PDP + PDP * ODP) * 2

    def tile_bytes(tb):   # double-buffered x tile + output tiles
        return 2 * (tb * C * S * 4 + tb * (out_dim * 4 + fc1_dim * 2))

    # ---- batch tile selection ----
    # Target large tiles (mem-bound tiles approach the HBM roofline around 512 rows),
    # but (a) fit a conservative 32 MiB VMEM budget (safe on v7x too) and
    # (b) keep >=2 grid steps so the "parallel" axis can shard across v7x's two
    # TensorCores and the x DMA pipelines against compute.
    vmem_budget = 32 * 2 ** 20
    TB = 512
    while TB > 8 and 2 * weight_bytes + tile_bytes(TB) > vmem_budget:
        TB //= 2
    while TB > 8 and pl.cdiv(B, TB) < 2:
        TB //= 2
    TB = max(TB, 8)

    # Feed x as (B, C, S) f32 directly (metadata-only reshape; no pad/cast copy).
    x3 = x_nchw.reshape(B, C, S).astype(jnp.float32)
    if pl.cdiv(B, TB) < 2:
        BP = 2 * TB                              # tiny batch: cheap pad so grid has 2 steps
        x3 = jnp.pad(x3, ((0, BP - B), (0, 0), (0, 0)))
    else:
        BP = B                                   # ragged last block handled by Pallas masking
    grid = (pl.cdiv(BP, TB),)

    needed = 2 * weight_bytes + tile_bytes(TB)
    vmem_limit = int(min(32 * 2 ** 20, max(16 * 2 ** 20, 2 * needed)))

    cost = pl.CostEstimate(
        flops=int(BP * C * S + 2 * BP * (C * F1P + F1P * PDP + PDP * ODP)),
        transcendentals=int(BP),
        bytes_accessed=int(BP * C * S * 4 + weight_bytes
                           + BP * (fc1_dim * 2 + out_dim * 4)),
    )

    kernel = functools.partial(_model_kernel, inv_s=1.0 / S,
                               fc1_dim=fc1_dim, out_dim=out_dim)

    projp, featp = pl.pallas_call(
        kernel,
        out_shape=(
            jax.ShapeDtypeStruct((BP, out_dim), jnp.float32),
            jax.ShapeDtypeStruct((BP, fc1_dim), jnp.bfloat16),
        ),
        grid=grid,
        in_specs=[
            # x tile streams (double-buffered).  If the DMA is still exposed on v5e,
            # pipeline_mode=pl.Buffered(3) on this spec is the next knob.
            pl.BlockSpec((TB, C, S), lambda i: (i, 0, 0)),
            pl.BlockSpec((C, F1P), lambda i: (0, 0)),     # weights stay resident
            pl.BlockSpec((1, F1P), lambda i: (0, 0)),
            pl.BlockSpec((F1P, PDP), lambda i: (0, 0)),
            pl.BlockSpec((1, PDP), lambda i: (0, 0)),
            pl.BlockSpec((PDP, ODP), lambda i: (0, 0)),
        ],
        out_specs=(
            pl.BlockSpec((TB, out_dim), lambda i: (i, 0)),    # unpadded columns
            pl.BlockSpec((TB, fc1_dim), lambda i: (i, 0)),    # unpadded columns, bf16
        ),
        compiler_params=pltpu.CompilerParams(
            dimension_semantics=("parallel",),                # megacore sharding on v7x
            vmem_limit_bytes=vmem_limit,
        ),
        cost_estimate=cost,
    )(x3, w1p, b1p, w2p, b2p, w3p)

    proj = projp[:B]
    feats = featp[:B]          # bf16 features (kept bf16 to avoid an extra wrapper pass)
    return proj, feats


def init_params(key, in_channels, fc1_dim, projection_dim, proj_out_dim):
    """Deterministic init mimicking nn.Linear's U(-1/sqrt(fan_in), 1/sqrt(fan_in))."""
    k0, k1, k2, k3, k4 = jax.random.split(key, 5)

    def lin_w(k, fan_in, fan_out):
        bound = 1.0 / jnp.sqrt(fan_in)
        return jax.random.uniform(k, (fan_in, fan_out), jnp.float32, -bound, bound)

    def lin_b(k, fan_in, fan_out):
        bound = 1.0 / jnp.sqrt(fan_in)
        return jax.random.uniform(k, (1, fan_out), jnp.float32, -bound, bound)

    return {
        "w0": lin_w(k0, in_channels, fc1_dim),         # synthetic backbone linear
        "b0": lin_b(k1, in_channels, fc1_dim),
        "w2": lin_w(k2, fc1_dim, projection_dim),      # fc2
        "b2": lin_b(k3, fc1_dim, projection_dim),
        "w3": lin_w(k4, projection_dim, proj_out_dim)  # fc3 (no bias)
    }


def _reference_forward(x_nchw, params):
    """Pure-JAX f32 reference of the same forward pass (for a loose bf16 check)."""
    B, C, H, W = x_nchw.shape
    pooled = jnp.mean(x_nchw.reshape(B, C, H * W), axis=-1)
    feat = jnp.maximum(pooled @ params["w0"] + params["b0"], 0.0)
    h = jnp.maximum(feat @ params["w2"] + params["b2"], 0.0)
    z = h @ params["w3"]
    norm = jnp.sqrt(jnp.sum(z * z, axis=1, keepdims=True))
    return z / jnp.maximum(norm, 1e-12), feat


if __name__ == "__main__":
    # opt-equivalent hyperparams (small, consistent with the module)
    B, C, H, W = 2, 4, 16, 16
    fc1_dim, projection_dim, proj_out_dim = 32, 16, 8

    key = jax.random.PRNGKey(0)
    kx, kp = jax.random.split(key)
    x = jax.random.normal(kx, (B, C, H, W), jnp.float32)
    params = init_params(kp, C, fc1_dim, projection_dim, proj_out_dim)

    proj, feats = contrastive_model_forward(x, params)
    jax.block_until_ready((proj, feats))

    # sanity checks
    assert proj.shape == (B, proj_out_dim)
    assert feats.shape == (B, fc1_dim)
    norms = jnp.linalg.norm(proj, axis=1)
    assert bool(jnp.all(jnp.abs(norms - 1.0) < 1e-4))

    # loose numerical check vs f32 reference (fc2/fc3 run in bf16, feat stored bf16)
    proj_ref, feat_ref = _reference_forward(x, params)
    assert bool(jnp.all(jnp.abs(proj - proj_ref) < 6e-2))
    assert bool(jnp.all(jnp.abs(feats.astype(jnp.float32) - feat_ref) < 6e-2))

    print("KERNEL_OK")
</pallas_src>

<mosaic_0001>
module attributes {stable_mosaic.version = 11 : i64} {
  func.func @_model_kernel(%arg0: i32, %arg1: memref<8x4x256xf32, #tpu.memory_space<vmem>>, %arg2: memref<4x128xf32, #tpu.memory_space<vmem>>, %arg3: memref<1x128xf32, #tpu.memory_space<vmem>>, %arg4: memref<128x128xbf16, #tpu.memory_space<vmem>>, %arg5: memref<1x128xf32, #tpu.memory_space<vmem>>, %arg6: memref<128x128xbf16, #tpu.memory_space<vmem>>, %arg7: memref<8x8xf32, #tpu.memory_space<vmem>>, %arg8: memref<8x32xbf16, #tpu.memory_space<vmem>>) attributes {dimension_semantics = [#tpu.dimension_semantics<parallel>], iteration_bounds = array<i64: 2>, scalar_prefetch = 0 : i64, scratch_operands = 0 : i64, tpu.core_type = #tpu.core_type<tc>, window_params = [{transform_indices = @transform_0, window_bounds = array<i64: 8, 4, 256>}, {pipeline_mode = #tpu.pipeline_mode<synchronous>, transform_indices = @transform_1, window_bounds = array<i64: 4, 128>}, {pipeline_mode = #tpu.pipeline_mode<synchronous>, transform_indices = @transform_2, window_bounds = array<i64: 1, 128>}, {pipeline_mode = #tpu.pipeline_mode<synchronous>, transform_indices = @transform_3, window_bounds = array<i64: 128, 128>}, {pipeline_mode = #tpu.pipeline_mode<synchronous>, transform_indices = @transform_4, window_bounds = array<i64: 1, 128>}, {pipeline_mode = #tpu.pipeline_mode<synchronous>, transform_indices = @transform_5, window_bounds = array<i64: 128, 128>}, {transform_indices = @transform_6, window_bounds = array<i64: 8, 8>}, {transform_indices = @transform_7, window_bounds = array<i64: 8, 32>}]} {
    %c0 = arith.constant 0 : index
    %c0_0 = arith.constant 0 : index
    %c0_1 = arith.constant 0 : index
    %0 = vector.load %arg1[%c0, %c0_0, %c0_1] : memref<8x4x256xf32, #tpu.memory_space<vmem>>, vector<8x4x256xf32>
    %cst = arith.constant dense<0.000000e+00> : vector<8x4xf32>
    %1 = vector.multi_reduction <add>, %0, %cst [2] : vector<8x4x256xf32> to vector<8x4xf32>
    %cst_2 = arith.constant 3.906250e-03 : f32
    %2 = vector.broadcast %cst_2 : f32 to vector<8x4xf32>
    %3 = arith.mulf %1, %2 : vector<8x4xf32>
    %c0_3 = arith.constant 0 : index
    %c0_4 = arith.constant 0 : index
    %4 = vector.load %arg2[%c0_3, %c0_4] : memref<4x128xf32, #tpu.memory_space<vmem>>, vector<4x128xf32>
    %cst_5 = arith.constant dense<0.000000e+00> : vector<8x128xf32>
    %5 = tpu.matmul %3, %4, %cst_5 {dimension_numbers = #tpu.dot_dimension_numbers<[1], [0], [0], [1], [0, 0, 1, 1], [], []>} : vector<8x4xf32>, vector<4x128xf32>, vector<8x128xf32> -> vector<8x128xf32>
    %c0_6 = arith.constant 0 : index
    %c0_7 = arith.constant 0 : index
    %6 = vector.load %arg3[%c0_6, %c0_7] : memref<1x128xf32, #tpu.memory_space<vmem>>, vector<1x128xf32>
    %7 = vector.broadcast %6 : vector<1x128xf32> to vector<8x128xf32>
    %8 = arith.addf %5, %7 : vector<8x128xf32>
    %cst_8 = arith.constant 0.000000e+00 : f32
    %9 = vector.broadcast %cst_8 : f32 to vector<8x128xf32>
    %10 = arith.maximumf %8, %9 : vector<8x128xf32>
    %11 = vector.extract_strided_slice %10 {offsets = [0, 0], sizes = [8, 32], strides = [1, 1]} : vector<8x128xf32> to vector<8x32xf32>
    %12 = arith.truncf %11 : vector<8x32xf32> to vector<8x32xbf16>
    %c0_9 = arith.constant 0 : index
    %c0_10 = arith.constant 0 : index
    %13 = vector.load %arg8[%c0_9, %c0_10] : memref<8x32xbf16, #tpu.memory_space<vmem>>, vector<8x32xbf16>
    tpu.vector_store %arg8[%c0_9, %c0_10], %12 {strides = array<i32>} : memref<8x32xbf16, #tpu.memory_space<vmem>>, vector<8x32xbf16>,
    %14 = arith.truncf %10 : vector<8x128xf32> to vector<8x128xbf16>
    %c0_11 = arith.constant 0 : index
    %c0_12 = arith.constant 0 : index
    %15 = vector.load %arg4[%c0_11, %c0_12] : memref<128x128xbf16, #tpu.memory_space<vmem>>, vector<128x128xbf16>
    %cst_13 = arith.constant dense<0.000000e+00> : vector<8x128xf32>
    %16 = tpu.matmul %14, %15, %cst_13 {dimension_numbers = #tpu.dot_dimension_numbers<[1], [0], [0], [1], [0, 0, 1, 1], [], []>} : vector<8x128xbf16>, vector<128x128xbf16>, vector<8x128xf32> -> vector<8x128xf32>
    %c0_14 = arith.constant 0 : index
    %c0_15 = arith.constant 0 : index
    %17 = vector.load %arg5[%c0_14, %c0_15] : memref<1x128xf32, #tpu.memory_space<vmem>>, vector<1x128xf32>
    %18 = vector.broadcast %17 : vector<1x128xf32> to vector<8x128xf32>
    %19 = arith.addf %16, %18 : vector<8x128xf32>
    %cst_16 = arith.constant 0.000000e+00 : f32
    %20 = vector.broadcast %cst_16 : f32 to vector<8x128xf32>
    %21 = arith.maximumf %19, %20 : vector<8x128xf32>
    %22 = arith.truncf %21 : vector<8x128xf32> to vector<8x128xbf16>
    %c0_17 = arith.constant 0 : index
    %c0_18 = arith.constant 0 : index
    %23 = vector.load %arg6[%c0_17, %c0_18] : memref<128x128xbf16, #tpu.memory_space<vmem>>, vector<128x128xbf16>
    %cst_19 = arith.constant dense<0.000000e+00> : vector<8x128xf32>
    %24 = tpu.matmul %22, %23, %cst_19 {dimension_numbers = #tpu.dot_dimension_numbers<[1], [0], [0], [1], [0, 0, 1, 1], [], []>} : vector<8x128xbf16>, vector<128x128xbf16>, vector<8x128xf32> -> vector<8x128xf32>
    %25 = arith.mulf %24, %24 : vector<8x128xf32>
    %cst_20 = arith.constant dense<0.000000e+00> : vector<8xf32>
    %26 = vector.multi_reduction <add>, %25, %cst_20 [1] : vector<8x128xf32> to vector<8xf32>
    %27 = vector.shape_cast %26 : vector<8xf32> to vector<8x1xf32>
    %cst_21 = arith.constant 1.000000e-24 : f32
    %28 = vector.broadcast %cst_21 : f32 to vector<8x1xf32>
    %29 = arith.maximumf %27, %28 : vector<8x1xf32>
    %30 = math.rsqrt %29 : vector<8x1xf32>
    %31 = vector.broadcast %30 : vector<8x1xf32> to vector<8x128xf32>
    %32 = arith.mulf %24, %31 : vector<8x128xf32>
    %33 = vector.extract_strided_slice %32 {offsets = [0, 0], sizes = [8, 8], strides = [1, 1]} : vector<8x128xf32> to vector<8x8xf32>
    %c0_22 = arith.constant 0 : index
    %c0_23 = arith.constant 0 : index
    %34 = vector.load %arg7[%c0_22, %c0_23] : memref<8x8xf32, #tpu.memory_space<vmem>>, vector<8x8xf32>
    tpu.vector_store %arg7[%c0_22, %c0_23], %33 {strides = array<i32>} : memref<8x8xf32, #tpu.memory_space<vmem>>, vector<8x8xf32>,
    return
  }
  func.func @transform_0(%arg0: i32) -> (i32, i32, i32) {
    %c0_i32 = arith.constant 0 : i32
    %c0_i32_0 = arith.constant 0 : i32
    %c0_i32_1 = arith.constant 0 : i32
    return %arg0, %c0_i32, %c0_i32_0 : i32, i32, i32
  }
  func.func @transform_1(%arg0: i32) -> (i32, i32) {
    %c0_i32 = arith.constant 0 : i32
    %c0_i32_0 = arith.constant 0 : i32
    %c0_i32_1 = arith.constant 0 : i32
    return %c0_i32, %c0_i32_0 : i32, i32
  }
  func.func @transform_2(%arg0: i32) -> (i32, i32) {
    %c0_i32 = arith.constant 0 : i32
    %c0_i32_0 = arith.constant 0 : i32
    %c0_i32_1 = arith.constant 0 : i32
    return %c0_i32, %c0_i32_0 : i32, i32
  }
  func.func @transform_3(%arg0: i32) -> (i32, i32) {
    %c0_i32 = arith.constant 0 : i32
    %c0_i32_0 = arith.constant 0 : i32
    %c0_i32_1 = arith.constant 0 : i32
    return %c0_i32, %c0_i32_0 : i32, i32
  }
  func.func @transform_4(%arg0: i32) -> (i32, i32) {
    %c0_i32 = arith.constant 0 : i32
    %c0_i32_0 = arith.constant 0 : i32
    %c0_i32_1 = arith.constant 0 : i32
    return %c0_i32, %c0_i32_0 : i32, i32
  }
  func.func @transform_5(%arg0: i32) -> (i32, i32) {
    %c0_i32 = arith.constant 0 : i32
    %c0_i32_0 = arith.constant 0 : i32
    %c0_i32_1 = arith.constant 0 : i32
    return %c0_i32, %c0_i32_0 : i32, i32
  }
  func.func @transform_6(%arg0: i32) -> (i32, i32) {
    %c0_i32 = arith.constant 0 : i32
    %c0_i32_0 = arith.constant 0 : i32
    return %arg0, %c0_i32 : i32, i32
  }
  func.func @transform_7(%arg0: i32) -> (i32, i32) {
    %c0_i32 = arith.constant 0 : i32
    %c0_i32_0 = arith.constant 0 : i32
    return %arg0, %c0_i32 : i32, i32
  }
}

</mosaic_0001>

<llo_original>
// kernel: tpu_custom_call.1
$region0: #{tpu_custom_call.1}
  #allocation0 [shape = 'u32[]', space=smem, size = 0x4, offset = 0x4, fixed_abs, tag = 'smem constant byte address 0x4 - core index']
  #allocation1 [shape = 'u32[144,128]{1,0:T(1,128)}', space=vmem, size = 0x12000, scoped, tag = 'internal scratch']
  %s0 = inlined_call_operand.hbm [shape: f32[16,4,256], index: 0, kind: input, shape index: {}]
  %s1 = inlined_call_operand.hbm [shape: f32[4,128], index: 1, kind: input, shape index: {}]
  %s2 = inlined_call_operand.vmem [shape: f32[1,128], index: 2, kind: input, shape index: {}]
  %s3 = inlined_call_operand.hbm [shape: bf16[128,128], index: 3, kind: input, shape index: {}]
  %s4 = inlined_call_operand.vmem [shape: f32[1,128], index: 4, kind: input, shape index: {}]
  %s5 = inlined_call_operand.hbm [shape: bf16[128,128], index: 5, kind: input, shape index: {}]
  %s6 = inlined_call_operand.vmem [shape: f32[16,8], index: 6, kind: output, shape index: {0}]
  %s7 = inlined_call_operand.hbm [shape: bf16[16,32], index: 7, kind: output, shape index: {1}]
  %8 = xla_tuple %s6, %s7
  %s9 = sld [smem:[#allocation0]]
  $region81: #{tpu_custom_call.1} parent=0
    _
  %s11 = ssub.s32 1, %s9
  %s12 = scalar_select 0, %s11, %s9
  $region1: #{tpu_custom_call.1} parent=0
    #allocation2 [shape = 'u8[65536]{0}', space=vmem, size = 0x10000, scoped, tag = 'input window, operand 0']
    #allocation3 [shape = 's32[2]{0}', space=sflag, size = 0x8, scoped, tag = 'scoped memory for tpu_custom_call.1']
    #allocation4 [shape = 's32[2]{0}', space=sflag, size = 0x8, scoped, tag = 'scoped memory for tpu_custom_call.1']
    #allocation5 [shape = 'u8[2048]{0}', space=vmem, size = 0x800, scoped, tag = 'input window, operand 1, single buffered']
    #allocation6 [shape = 's32[1]{0}', space=sflag, size = 0x4, scoped, tag = 'scoped memory for tpu_custom_call.1']
    #allocation7 [shape = 'u8[32768]{0}', space=vmem, size = 0x8000, scoped, tag = 'input window, operand 3, single buffered']
    #allocation8 [shape = 'u8[32768]{0}', space=vmem, size = 0x8000, scoped, tag = 'input window, operand 5, single buffered']
    #allocation9 [shape = 's32[1]{0}', space=sflag, size = 0x4, scoped, tag = 'scoped memory for tpu_custom_call.1']
    #allocation10 [shape = 'u8[4096]{0}', space=vmem, size = 0x1000, scoped, tag = 'output window, operand 1']
    %13 = vsyncpa [#allocation3], 0
    %s14 = scalar_lea.sflag [#allocation3], 1
    %15 = vsyncpa %s14, 0
    %16 = vsyncpa [#allocation6], 0
    %17 = vsyncpa [#allocation9], 0
    %18 = vsyncpa [#allocation4], 0
    %s19 = scalar_lea.sflag [#allocation4], 1
    %20 = vsyncpa %s19, 0
    loop: start=0, step=1, limit=4
    $region2: #{tpu_custom_call.1} parent=1 // loop_pre_header
      _
    $region3: #{tpu_custom_call.1} parent=1 // loop_header
      %s22 = sphi 0, %s26
      %p23 = scmp.ge.s32.totalorder %s22, 4
      %s32 = sphi 0, %s34
      %s35 = sphi 0, %s32
      %s36 = sphi 0, %s35
      %s52 = sphi 0, %s36
      %s56 = sphi 0, %s56
      %s58 = sphi 0, %s56
      %s59 = sphi 0, %s58
      %s73 = sphi 0, %s59
      %s77 = sphi 0, %s77
      %s79 = sphi 0, %s77
      %s80 = sphi 0, %s79
      %s94 = sphi 0, %s80
      %s98 = sphi 0, %s98
      %s100 = sphi 0, %s98
      %s101 = sphi 0, %s100
      %s115 = sphi 0, %s101
      %s119 = sphi 0, %s119
      %s121 = sphi 0, %s119
      %s122 = sphi 0, %s121
      %s136 = sphi 0, %s122
      %s140 = sphi 0, %s140
      %s142 = sphi 0, %s140
      %s143 = sphi 0, %s142
      %s157 = sphi 0, %s143
      %s163 = sphi 0, %s165
      %s166 = sphi 0, %s163
      %s167 = sphi 0, %s166
      %s183 = sphi 0, %s167
      %s189 = sphi 0, %s191
      %s192 = sphi 0, %s189
      %s193 = sphi 0, %s192
      %s209 = sphi 0, %s193
    $region4: #{tpu_custom_call.1} parent=1 // loop_header_branch
      %25 = sbr.rel (%p23) target = $region8
    $region5: #{tpu_custom_call.1} parent=1 // loop_body
      %s27 = ssub.s32 %s22, 1
      %s28 = ssub.s32 %s22, 2
      %s29 = sadd.s32 %s22, 1
      %s30 = ssub.s32 %s22, %s29
      %p31 = scmp.eq.s32.totalorder %s30, 0
      %s33 = sadd.s32 %s32, 1
      %s34 = scalar_select %p31, %s32, %s33
      %p37 = pneg %p31
      %p38 = scmp.eq.s32.totalorder %s22, 1
      %p39 = por %p37, %p38
      %p40 = scmp.ne.s32.totalorder %s32, %s35
      %p41 = scmp.eq.s32.totalorder %s22, 0
      %p42 = por %p40, %p41
      %p43 = scmp.ne.s32.totalorder %s32, %s35
      %p44 = scmp.eq.s32.totalorder %s27, 1
      %p45 = por %p43, %p44
      %p46 = scmp.ne.s32.totalorder %s35, %s36
      %p47 = scmp.eq.s32.totalorder %s27, 0
      %p48 = por %p46, %p47
      %p49 = scmp.ne.s32.totalorder %s35, %s36
      %p50 = scmp.eq.s32.totalorder %s28, 1
      %p51 = por %p49, %p50
      %p53 = scmp.ne.s32.totalorder %s36, %s52
      %p54 = scmp.eq.s32.totalorder %s28, 0
      %p55 = por %p53, %p54
      %s57 = sadd.s32 %s56, 1
      %p60 = scmp.eq.s32.totalorder %s22, 1
      %p61 = scmp.ne.s32.totalorder %s56, %s58
      %p62 = scmp.eq.s32.totalorder %s22, 0
      %p63 = por %p61, %p62
      %p64 = scmp.ne.s32.totalorder %s56, %s58
      %p65 = scmp.eq.s32.totalorder %s27, 1
      %p66 = por %p64, %p65
      %p67 = scmp.ne.s32.totalorder %s58, %s59
      %p68 = scmp.eq.s32.totalorder %s27, 0
      %p69 = por %p67, %p68
      %p70 = scmp.ne.s32.totalorder %s58, %s59
      %p71 = scmp.eq.s32.totalorder %s28, 1
      %p72 = por %p70, %p71
      %p74 = scmp.ne.s32.totalorder %s59, %s73
      %p75 = scmp.eq.s32.totalorder %s28, 0
      %p76 = por %p74, %p75
      %s78 = sadd.s32 %s77, 1
      %p81 = scmp.eq.s32.totalorder %s22, 1
      %p82 = scmp.ne.s32.totalorder %s77, %s79
      %p83 = scmp.eq.s32.totalorder %s22, 0
      %p84 = por %p82, %p83
      %p85 = scmp.ne.s32.totalorder %s77, %s79
      %p86 = scmp.eq.s32.totalorder %s27, 1
      %p87 = por %p85, %p86
      %p88 = scmp.ne.s32.totalorder %s79, %s80
      %p89 = scmp.eq.s32.totalorder %s27, 0
      %p90 = por %p88, %p89
      %p91 = scmp.ne.s32.totalorder %s79, %s80
      %p92 = scmp.eq.s32.totalorder %s28, 1
      %p93 = por %p91, %p92
      %p95 = scmp.ne.s32.totalorder %s80, %s94
      %p96 = scmp.eq.s32.totalorder %s28, 0
      %p97 = por %p95, %p96
      %s99 = sadd.s32 %s98, 1
      %p102 = scmp.eq.s32.totalorder %s22, 1
      %p103 = scmp.ne.s32.totalorder %s98, %s100
      %p104 = scmp.eq.s32.totalorder %s22, 0
      %p105 = por %p103, %p104
      %p106 = scmp.ne.s32.totalorder %s98, %s100
      %p107 = scmp.eq.s32.totalorder %s27, 1
      %p108 = por %p106, %p107
      %p109 = scmp.ne.s32.totalorder %s100, %s101
      %p110 = scmp.eq.s32.totalorder %s27, 0
      %p111 = por %p109, %p110
      %p112 = scmp.ne.s32.totalorder %s100, %s101
      %p113 = scmp.eq.s32.totalorder %s28, 1
      %p114 = por %p112, %p113
      %p116 = scmp.ne.s32.totalorder %s101, %s115
      %p117 = scmp.eq.s32.totalorder %s28, 0
      %p118 = por %p116, %p117
      %s120 = sadd.s32 %s119, 1
      %p123 = scmp.eq.s32.totalorder %s22, 1
      %p124 = scmp.ne.s32.totalorder %s119, %s121
      %p125 = scmp.eq.s32.totalorder %s22, 0
      %p126 = por %p124, %p125
      %p127 = scmp.ne.s32.totalorder %s119, %s121
      %p128 = scmp.eq.s32.totalorder %s27, 1
      %p129 = por %p127, %p128
      %p130 = scmp.ne.s32.totalorder %s121, %s122
      %p131 = scmp.eq.s32.totalorder %s27, 0
      %p132 = por %p130, %p131
      %p133 = scmp.ne.s32.totalorder %s121, %s122
      %p134 = scmp.eq.s32.totalorder %s28, 1
      %p135 = por %p133, %p134
      %p137 = scmp.ne.s32.totalorder %s122, %s136
      %p138 = scmp.eq.s32.totalorder %s28, 0
      %p139 = por %p137, %p138
      %s141 = sadd.s32 %s140, 1
      %p144 = scmp.eq.s32.totalorder %s22, 1
      %p145 = scmp.ne.s32.totalorder %s140, %s142
      %p146 = scmp.eq.s32.totalorder %s22, 0
      %p147 = por %p145, %p146
      %p148 = scmp.ne.s32.totalorder %s140, %s142
      %p149 = scmp.eq.s32.totalorder %s27, 1
      %p150 = por %p148, %p149
      %p151 = scmp.ne.s32.totalorder %s142, %s143
      %p152 = scmp.eq.s32.totalorder %s27, 0
      %p153 = por %p151, %p152
      %p154 = scmp.ne.s32.totalorder %s142, %s143
      %p155 = scmp.eq.s32.totalorder %s28, 1
      %p156 = por %p154, %p155
      %p158 = scmp.ne.s32.totalorder %s143, %s157
      %p159 = scmp.eq.s32.totalorder %s28, 0
      %p160 = por %p158, %p159
      %s161 = ssub.s32 %s22, %s29
      %p162 = scmp.eq.s32.totalorder %s161, 0
      %s164 = sadd.s32 %s163, 1
      %s165 = scalar_select %p162, %s163, %s164
      %p168 = pneg %p162
      %p169 = scmp.eq.s32.totalorder %s22, 1
      %p170 = por %p168, %p169
      %p171 = scmp.ne.s32.totalorder %s163, %s166
      %p172 = scmp.eq.s32.totalorder %s22, 0
      %p173 = por %p171, %p172
      %p174 = scmp.ne.s32.totalorder %s163, %s166
      %p175 = scmp.eq.s32.totalorder %s27, 1
      %p176 = por %p174, %p175
      %p177 = scmp.ne.s32.totalorder %s166, %s167
      %p178 = scmp.eq.s32.totalorder %s27, 0
      %p179 = por %p177, %p178
      %p180 = scmp.ne.s32.totalorder %s166, %s167
      %p181 = scmp.eq.s32.totalorder %s28, 1
      %p182 = por %p180, %p181
      %p184 = scmp.ne.s32.totalorder %s167, %s183
      %p185 = scmp.eq.s32.totalorder %s28, 0
      %p186 = por %p184, %p185
      %s187 = ssub.s32 %s22, %s29
      %p188 = scmp.eq.s32.totalorder %s187, 0
      %s190 = sadd.s32 %s189, 1
      %s191 = scalar_select %p188, %s189, %s190
      %p194 = pneg %p188
      %p195 = scmp.eq.s32.totalorder %s22, 1
      %p196 = por %p194, %p195
      %p197 = scmp.ne.s32.totalorder %s189, %s192
      %p198 = scmp.eq.s32.totalorder %s22, 0
      %p199 = por %p197, %p198
      %p200 = scmp.ne.s32.totalorder %s189, %s192
      %p201 = scmp.eq.s32.totalorder %s27, 1
      %p202 = por %p200, %p201
      %p203 = scmp.ne.s32.totalorder %s192, %s193
      %p204 = scmp.eq.s32.totalorder %s27, 0
      %p205 = por %p203, %p204
      %p206 = scmp.ne.s32.totalorder %s192, %s193
      %p207 = scmp.eq.s32.totalorder %s28, 1
      %p208 = por %p206, %p207
      %p210 = scmp.ne.s32.totalorder %s193, %s209
      %p211 = scmp.eq.s32.totalorder %s28, 0
      %p212 = por %p210, %p211
      %p213 = scmp.le.s32.totalorder 1, %s22
      %p214 = scmp.lt.s32.totalorder %s22, 3
      %p215 = pnand %p213, %p214
      %p216 = pneg %p215
      // Predicated region
      $region9: #{tpu_custom_call.1} parent=5 // pred_check
        _
      $region10: #{tpu_custom_call.1} parent=5 // pred_check_branch
        %218 = sbr.rel (%p215) target = $region12
      $region11: #{tpu_custom_call.1} parent=5 // pred_region
        %s219 = ssub.s32 %s22, 1
        // Predicated region
        $region13: #{tpu_custom_call.1} parent=11 // pred_check
          %p220 = pneg %p69
        $region14: #{tpu_custom_call.1} parent=11 // pred_check_branch
          %222 = sbr.rel (%p220) target = $region16
        $region15: #{tpu_custom_call.1} parent=11 // pred_region
          %s224 = ssub.s32 64, 64
          %225 = vsyncadd [#allocation6], %s224
          %s227 = sshll.u32 [#allocation5], 4
          %s228 = int_to_ptr.vmem [resolvable:$true] %s227
          %230 = dma.hbm_to_vmem [thread:$0]  %s1, 64, %s228, [#allocation6]
        $region16: #{tpu_custom_call.1} parent=11 // pred_fallthru
          _
        // Predicated region
        $region17: #{tpu_custom_call.1} parent=11 // pred_check
          %p231 = pneg %p90
        $region18: #{tpu_custom_call.1} parent=11 // pred_check_branch
          %233 = sbr.rel (%p231) target = $region20
        $region19: #{tpu_custom_call.1} parent=11 // pred_region
          _
        $region20: #{tpu_custom_call.1} parent=11 // pred_fallthru
          _
        // Predicated region
        $region21: #{tpu_custom_call.1} parent=11 // pred_check
          %p234 = pneg %p111
        $region22: #{tpu_custom_call.1} parent=11 // pred_check_branch
          %236 = sbr.rel (%p234) target = $region24
        $region23: #{tpu_custom_call.1} parent=11 // pred_region
          %s238 = ssub.s32 1024, 1024
          %239 = vsyncadd [#allocation6], %s238
          %s240 = sshll.u32 [#allocation7], 4
          %s241 = int_to_ptr.vmem [resolvable:$true] %s240
          %246 = dma.hbm_to_vmem [thread:$0]  %s3, 1024, %s241, [#allocation6], 64, 64, 4
        $region24: #{tpu_custom_call.1} parent=11 // pred_fallthru
          _
        // Predicated region
        $region25: #{tpu_custom_call.1} parent=11 // pred_check
          %p247 = pneg %p132
        $region26: #{tpu_custom_call.1} parent=11 // pred_check_branch
          %249 = sbr.rel (%p247) target = $region28
        $region27: #{tpu_custom_call.1} parent=11 // pred_region
          _
        $region28: #{tpu_custom_call.1} parent=11 // pred_fallthru
          _
        // Predicated region
        $region29: #{tpu_custom_call.1} parent=11 // pred_check
          %p250 = pneg %p153
        $region30: #{tpu_custom_call.1} parent=11 // pred_check_branch
          %252 = sbr.rel (%p250) target = $region32
        $region31: #{tpu_custom_call.1} parent=11 // pred_region
          %s254 = ssub.s32 1024, 1024
          %255 = vsyncadd [#allocation9], %s254
          %s256 = sshll.u32 [#allocation8], 4
          %s257 = int_to_ptr.vmem [resolvable:$true] %s256
          %262 = dma.hbm_to_vmem [thread:$0]  %s5, 1024, %s257, [#allocation9], 64, 64, 4
        $region32: #{tpu_custom_call.1} parent=11 // pred_fallthru
          _
      $region12: #{tpu_custom_call.1} parent=5 // pred_fallthru
        _
      %p263 = scmp.lt.s32.totalorder %s22, 2
      // Predicated region
      $region33: #{tpu_custom_call.1} parent=5 // pred_check
        %p264 = pneg %p263
      $region34: #{tpu_custom_call.1} parent=5 // pred_check_branch
        %266 = sbr.rel (%p264) target = $region36
      $region35: #{tpu_custom_call.1} parent=5 // pred_region
        // Predicated region
        $region37: #{tpu_custom_call.1} parent=35 // pred_check
          %p267 = pneg %p42
        $region38: #{tpu_custom_call.1} parent=35 // pred_check_branch
          %269 = sbr.rel (%p267) target = $region40
        $region39: #{tpu_custom_call.1} parent=35 // pred_region
          %s270 = sand.u32 %s32, 1
          %s271 = scalar_lea.sflag [#allocation3], %s270
          %s272 = sand.u32 %s32, 1
          %s273 = smul.addr %s272, 64
          %s274 = scalar_lea.vmem [#allocation2], %s273
          %s275 = smul.u32 8, %s22
          %s277 = ssub.s32 1024, 1024
          %278 = vsyncadd %s271, %s277
          %s279 = smul.addr %s275, 2
          %s280 = smul.addr %s279, 64
          %s281 = scalar_lea.hbm %s0, %s280
          %s282 = sshll.u32 %s274, 4
          %s283 = int_to_ptr.vmem [resolvable:$true] %s282
          %288 = dma.hbm_to_vmem [thread:$0]  %s281, 1024, %s283, %s271, 128, 128, 8
        $region40: #{tpu_custom_call.1} parent=35 // pred_fallthru
          _
      $region36: #{tpu_custom_call.1} parent=5 // pred_fallthru
        _
      %p289 = scmp.le.s32.totalorder 1, %s22
      %p290 = scmp.lt.s32.totalorder %s22, 3
      %p291 = pnand %p289, %p290
      %p292 = pneg %p291
      // Predicated region
      $region41: #{tpu_custom_call.1} parent=5 // pred_check
        _
      $region42: #{tpu_custom_call.1} parent=5 // pred_check_branch
        %294 = sbr.rel (%p291) target = $region44
      $region43: #{tpu_custom_call.1} parent=5 // pred_region
        %s295 = ssub.s32 %s22, 1
        %s296 = sand.u32 %s35, 1
        %s297 = scalar_lea.sflag [#allocation3], %s296
        %s298 = sand.u32 %s35, 1
        %s299 = smul.addr %s298, 64
        %s300 = scalar_lea.vmem [#allocation2], %s299
        // Predicated region
        $region45: #{tpu_custom_call.1} parent=43 // pred_check
          %p301 = pneg %p48
        $region46: #{tpu_custom_call.1} parent=43 // pred_check_branch
          %303 = sbr.rel (%p301) target = $region48
        $region47: #{tpu_custom_call.1} parent=43 // pred_region
          %304 = dma.done %s297, 1024
        $region48: #{tpu_custom_call.1} parent=43 // pred_fallthru
          _
        // Predicated region
        $region49: #{tpu_custom_call.1} parent=43 // pred_check
          %p305 = pneg %p69
        $region50: #{tpu_custom_call.1} parent=43 // pred_check_branch
          %307 = sbr.rel (%p305) target = $region52
        $region51: #{tpu_custom_call.1} parent=43 // pred_region
          %308 = dma.done [#allocation6], 64
        $region52: #{tpu_custom_call.1} parent=43 // pred_fallthru
          _
        // Predicated region
        $region53: #{tpu_custom_call.1} parent=43 // pred_check
          %p309 = pneg %p111
        $region54: #{tpu_custom_call.1} parent=43 // pred_check_branch
          %311 = sbr.rel (%p309) target = $region56
        $region55: #{tpu_custom_call.1} parent=43 // pred_region
          %312 = dma.done [#allocation6], 1024
        $region56: #{tpu_custom_call.1} parent=43 // pred_fallthru
          _
        // Predicated region
        $region57: #{tpu_custom_call.1} parent=43 // pred_check
          %p313 = pneg %p153
        $region58: #{tpu_custom_call.1} parent=43 // pred_check_branch
          %315 = sbr.rel (%p313) target = $region60
        $region59: #{tpu_custom_call.1} parent=43 // pred_region
          %316 = dma.done [#allocation9], 1024
        $region60: #{tpu_custom_call.1} parent=43 // pred_fallthru
          _
        %s317 = sand.u32 %s35, 1
        %s318 = scalar_lea.sflag [#allocation3], %s317
        %s319 = sand.u32 %s35, 1
        %s320 = smul.addr %s319, 64
        %s321 = scalar_lea.vmem [#allocation2], %s320
        %p322 = pneg %p48
        %p323 = pneg %p45
        %p324 = pneg %p69
        %p325 = pneg %p66
        %p326 = pneg %p90
        %p327 = pneg %p87
        %p328 = pneg %p111
        %p329 = pneg %p108
        %p330 = pneg %p132
        %p331 = pneg %p129
        %p332 = pneg %p153
        %p333 = pneg %p150
        %p334 = pneg %p179
        %p335 = pneg %p176
        %p336 = scmp.lt.s32.totalorder %s27, 1
        %s337 = scalar_select %p336, %s27, 1
        %s338 = smul.addr %s337, 8
        %s339 = scalar_lea.vmem %s6, %s338
        %p340 = pneg %p205
        %p341 = pneg %p202
        %s342 = sand.u32 %s192, 1
        %s343 = scalar_lea.sflag [#allocation4], %s342
        %s344 = sand.u32 %s192, 1
        %s345 = smul.addr %s344, 4
        %s346 = scalar_lea.vmem [#allocation10], %s345
        %s347 = smul.u32 8, %s27
        %p348 = scmp.lt.s32.totalorder %s27, 1
        %s349 = scalar_select %p348, %s27, 1
        %s350 = smul.addr %s349, 8
        %s351 = scalar_lea.vmem %s6, %s350
        %v353 = vld [vmem:[%s300] sm:$0xff]
        %v354 = vld [vmem:[%s300 + $0x8] sm:$0xff]
        %v355 = vld [vmem:[%s300 + $0x10] sm:$0xff]
        %v356 = vld [vmem:[%s300 + $0x18] sm:$0xff]
        %v357 = vld [vmem:[%s300 + $0x20] sm:$0xff]
        %v358 = vld [vmem:[%s300 + $0x28] sm:$0xff]
        %v359 = vld [vmem:[%s300 + $0x30] sm:$0xff]
        %v360 = vld [vmem:[%s300 + $0x38] sm:$0xff]
        %v369 = vcombine.high %v353, %v353
        %v370 = vcombine.high %v354, %v354
        %v371 = vcombine.high %v355, %v355
        %v372 = vcombine.high %v356, %v356
        %v373 = vcombine.high %v357, %v357
        %v374 = vcombine.high %v358, %v358
        %v375 = vcombine.high %v359, %v359
        %v376 = vcombine.high %v360, %v360
        %vm385 = vcmask 1043456
        %v386 = vsel %vm385, %v353, 0.0
        %v387 = vsel %vm385, %v369, 0.0
        %v388 = vadd.f32 %v386, %v387
        %389 = vadd.xlane.f32.xlu0 %v388
        %v390 = vpop.xlane.xlu0 %389
        %v391 = vsel %vm385, %v354, 0.0
        %v392 = vsel %vm385, %v370, 0.0
        %v393 = vadd.f32 %v391, %v392
        %394 = vadd.xlane.f32.xlu0 %v393
        %v395 = vpop.xlane.xlu0 %394
        %v396 = vsel %vm385, %v355, 0.0
        %v397 = vsel %vm385, %v371, 0.0
        %v398 = vadd.f32 %v396, %v397
        %399 = vadd.xlane.f32.xlu0 %v398
        %v400 = vpop.xlane.xlu0 %399
        %v401 = vsel %vm385, %v356, 0.0
        %v402 = vsel %vm385, %v372, 0.0
        %v403 = vadd.f32 %v401, %v402
        %404 = vadd.xlane.f32.xlu0 %v403
        %v405 = vpop.xlane.xlu0 %404
        %v406 = vsel %vm385, %v357, 0.0
        %v407 = vsel %vm385, %v373, 0.0
        %v408 = vadd.f32 %v406, %v407
        %409 = vadd.xlane.f32.xlu0 %v408
        %v410 = vpop.xlane.xlu0 %409
        %v411 = vsel %vm385, %v358, 0.0
        %v412 = vsel %vm385, %v374, 0.0
        %v413 = vadd.f32 %v411, %v412
        %414 = vadd.xlane.f32.xlu0 %v413
        %v415 = vpop.xlane.xlu0 %414
        %v416 = vsel %vm385, %v359, 0.0
        %v417 = vsel %vm385, %v375, 0.0
        %v418 = vadd.f32 %v416, %v417
        %419 = vadd.xlane.f32.xlu0 %v418
        %v420 = vpop.xlane.xlu0 %419
        %v421 = vsel %vm385, %v360, 0.0
        %v422 = vsel %vm385, %v376, 0.0
        %v423 = vadd.f32 %v421, %v422
        %424 = vadd.xlane.f32.xlu0 %v423
        %v425 = vpop.xlane.xlu0 %424
        %v426 = vmul.f32 %v390, 0.00390625
        %v427 = vmul.f32 %v395, 0.00390625
        %v428 = vmul.f32 %v400, 0.00390625
        %v429 = vmul.f32 %v405, 0.00390625
        %v430 = vmul.f32 %v410, 0.00390625
        %v431 = vmul.f32 %v415, 0.00390625
        %v432 = vmul.f32 %v420, 0.00390625
        %v433 = vmul.f32 %v425, 0.00390625
        %v434 = vld [vmem:[#allocation5] sm:$0xf]
        %v435 = vld [vmem:[%s2] sm:$0x1]
        %v437 = vlaneseq
        %v438 = vshrl.u32 %v437, 7
        %v439 = vsub.s32 0, %v438
        %v440 = vrot.slane %v435, %v439
        %v450 = vlaneseq
        %v451 = vand.u32 %v450, 127
        %v452 = vlaneseq
        %v453 = vshrl.u32 %v452, 7
        %v454 = vsub.s32 %v451, %v453
        %v455 = vrot.slane %v426, %v454
        %v456 = vlaneseq
        %v457 = vshrl.u32 %v456, 7
        %v458 = vsub.s32 %v451, %v457
        %v459 = vrot.slane %v427, %v458
        %v460 = vlaneseq
        %v461 = vshrl.u32 %v460, 7
        %v462 = vsub.s32 %v451, %v461
        %v463 = vrot.slane %v428, %v462
        %v464 = vlaneseq
        %v465 = vshrl.u32 %v464, 7
        %v466 = vsub.s32 %v451, %v465
        %v467 = vrot.slane %v429, %v466
        %v468 = vlaneseq
        %v469 = vshrl.u32 %v468, 7
        %v470 = vsub.s32 %v451, %v469
        %v471 = vrot.slane %v430, %v470
        %v472 = vlaneseq
        %v473 = vshrl.u32 %v472, 7
        %v474 = vsub.s32 %v451, %v473
        %v475 = vrot.slane %v431, %v474
        %v476 = vlaneseq
        %v477 = vshrl.u32 %v476, 7
        %v478 = vsub.s32 %v451, %v477
        %v479 = vrot.slane %v432, %v478
        %v480 = vlaneseq
        %v481 = vshrl.u32 %v480, 7
        %v482 = vsub.s32 %v451, %v481
        %v483 = vrot.slane %v433, %v482
        %vm484 = vcmask 1041409
        %v485 = vsel %vm484, %v459, %v455
        %vm486 = vcmask 1042434
        %v487 = vsel %vm486, %v463, %v485
        %vm488 = vcmask 1043459
        %v489 = vsel %vm488, %v467, %v487
        %vm490 = vcmask 1044484
        %v491 = vsel %vm490, %v471, %v489
        %vm492 = vcmask 1045509
        %v493 = vsel %vm492, %v475, %v491
        %vm494 = vcmask 1046534
        %v495 = vsel %vm494, %v479, %v493
        %vm496 = vcmask 1047559
        %v497 = vsel %vm496, %v483, %v495
        %vm498 = vcmask 31744
        %v499 = vsel %vm498, %v497, 0
        %v502 = vsel %vm385, %v434, 0
        %504 = vmatprep.subr.mxu0 0.0
        %505 = vmatpush1.msra.mxu0 %v502
        %506 = vmatprep.subr.mxu0 0.0
        %507 = vmatpush1.msra.mxu0 0.0
        %508 = vmatprep.subr.mxu0 0.0
        %509 = vmatpush1.msra.mxu0 0.0
        %510 = vmatprep.subr.mxu0 0.0
        %511 = vmatpush1.msra.mxu0 0.0
        %512 = vmatprep.subr.mxu0 0.0
        %513 = vmatpush1.msra.mxu0 0.0
        %514 = vmatprep.subr.mxu0 0.0
        %515 = vmatpush1.msra.mxu0 0.0
        %516 = vmatprep.subr.mxu0 0.0
        %517 = vmatpush1.msra.mxu0 0.0
        %518 = vmatprep.subr.mxu0 0.0
        %519 = vmatpush1.msra.mxu0 0.0
        %520 = vmatprep.subr.mxu0 0.0
        %521 = vmatpush1.msra.mxu0 0.0
        %522 = vmatprep.subr.mxu0 0.0
        %523 = vmatpush1.msra.mxu0 0.0
        %524 = vmatprep.subr.mxu0 0.0
        %525 = vmatpush1.msra.mxu0 0.0
        %526 = vmatprep.subr.mxu0 0.0
        %527 = vmatpush1.msra.mxu0 0.0
        %528 = vmatprep.subr.mxu0 0.0
        %529 = vmatpush1.msra.mxu0 0.0
        %530 = vmatprep.subr.mxu0 0.0
        %531 = vmatpush1.msra.mxu0 0.0
        %532 = vmatprep.subr.mxu0 0.0
        %533 = vmatpush1.msra.mxu0 0.0
        %534 = vmatprep.subr.mxu0 0.0
        %535 = vmatpush1.msra.mxu0 0.0
        %536 = vmatprep.subr.mxu0 0.0
        %537 = vmatpush1.msra.mxu0 0.0
        %538 = vmatprep.subr.mxu0 0.0
        %539 = vmatpush1.msra.mxu0 0.0
        %540 = vmatprep.subr.mxu0 0.0
        %541 = vmatpush1.msra.mxu0 0.0
        %542 = vmatprep.subr.mxu0 0.0
        %543 = vmatpush1.msra.mxu0 0.0
        %544 = vmatprep.subr.mxu0 0.0
        %545 = vmatpush1.msra.mxu0 0.0
        %546 = vmatprep.subr.mxu0 0.0
        %547 = vmatpush1.msra.mxu0 0.0
        %548 = vmatprep.subr.mxu0 0.0
        %549 = vmatpush1.msra.mxu0 0.0
        %550 = vmatprep.subr.mxu0 0.0
        %551 = vmatpush1.msra.mxu0 0.0
        %552 = vmatprep.subr.mxu0 0.0
        %553 = vmatpush1.msra.mxu0 0.0
        %554 = vmatprep.subr.mxu0 0.0
        %555 = vmatpush1.msra.mxu0 0.0
        %556 = vmatprep.subr.mxu0 0.0
        %557 = vmatpush1.msra.mxu0 0.0
        %558 = vmatprep.subr.mxu0 0.0
        %559 = vmatpush1.msra.mxu0 0.0
        %560 = vmatprep.subr.mxu0 0.0
        %561 = vmatpush1.msra.mxu0 0.0
        %562 = vmatprep.subr.mxu0 0.0
        %563 = vmatpush1.msra.mxu0 0.0
        %564 = vmatprep.subr.mxu0 0.0
        %565 = vmatpush1.msra.mxu0 0.0
        %566 = vmatprep.subr.mxu0 0.0
        %567 = vmatpush1.msra.mxu0 0.0
        %568 = vmatprep.mubr.f32.mxu0 0.0
        %569 = vmatmul.mubr.f32.gmra.mrb[0].mxu0 %v499
        %v570 = vpop.f32.mrb[0].mxu0
        %v571 = vadd.f32 %v440, %v570
        %v572 = vpop.f32.mrb[0].mxu0
        %573 = vdwg.mxu0
        %v574 = vmax.f32 %v571, 0.0
        %v575 = vpack.c.bf16 %v574, %v574
        %vm576 = vcmask 257024
        %577 = vst.msk [vmem:[%s346] sm:$0xf] %vm576, %v575
        %v578 = vld [vmem:[#allocation7] sm:$0xf]
        %v579 = vld [vmem:[#allocation7 + $0x4] sm:$0xf]
        %v580 = vld [vmem:[#allocation7 + $0x8] sm:$0xf]
        %v581 = vld [vmem:[#allocation7 + $0xc] sm:$0xf]
        %v582 = vld [vmem:[#allocation7 + $0x10] sm:$0xf]
        %v583 = vld [vmem:[#allocation7 + $0x14] sm:$0xf]
        %v584 = vld [vmem:[#allocation7 + $0x18] sm:$0xf]
        %v585 = vld [vmem:[#allocation7 + $0x1c] sm:$0xf]
        %v586 = vld [vmem:[#allocation7 + $0x20] sm:$0xf]
        %v587 = vld [vmem:[#allocation7 + $0x24] sm:$0xf]
        %v588 = vld [vmem:[#allocation7 + $0x28] sm:$0xf]
        %v589 = vld [vmem:[#allocation7 + $0x2c] sm:$0xf]
        %v590 = vld [vmem:[#allocation7 + $0x30] sm:$0xf]
        %v591 = vld [vmem:[#allocation7 + $0x34] sm:$0xf]
        %v592 = vld [vmem:[#allocation7 + $0x38] sm:$0xf]
        %v593 = vld [vmem:[#allocation7 + $0x3c] sm:$0xf]
        %v594 = vld [vmem:[%s4] sm:$0x1]
        %v596 = vlaneseq
        %v597 = vshrl.u32 %v596, 7
        %v598 = vsub.s32 0, %v597
        %v599 = vrot.slane %v594, %v598
        %v617 = vunpack.c.l.b16 %v578
        %v618 = vunpack.c.l.b16 %v579
        %v619 = vunpack.c.l.b16 %v580
        %v620 = vunpack.c.l.b16 %v581
        %v621 = vunpack.c.l.b16 %v582
        %v622 = vunpack.c.l.b16 %v583
        %v623 = vunpack.c.l.b16 %v584
        %v624 = vunpack.c.l.b16 %v585
        %v625 = vunpack.c.l.b16 %v586
        %v626 = vunpack.c.l.b16 %v587
        %v627 = vunpack.c.l.b16 %v588
        %v628 = vunpack.c.l.b16 %v589
        %v629 = vunpack.c.l.b16 %v590
        %v630 = vunpack.c.l.b16 %v591
        %v631 = vunpack.c.l.b16 %v592
        %v632 = vunpack.c.l.b16 %v593
        %v633 = vpack.c.b16 %v618, %v617
        %v634 = vpack.c.b16 %v620, %v619
        %v635 = vpack.c.b16 %v622, %v621
        %v636 = vpack.c.b16 %v624, %v623
        %v637 = vpack.c.b16 %v626, %v625
        %v638 = vpack.c.b16 %v628, %v627
        %v639 = vpack.c.b16 %v630, %v629
        %v640 = vpack.c.b16 %v632, %v631
        %649 = vmatprep.subr.bf16.mxu0 0
        %650 = vmatpush1.bf16.msra.mxu0 %v633
        %651 = vmatprep.subr.bf16.mxu0 0
        %652 = vmatpush1.bf16.msra.mxu0 %v634
        %653 = vmatprep.subr.bf16.mxu0 0
        %654 = vmatpush1.bf16.msra.mxu0 %v635
        %655 = vmatprep.subr.bf16.mxu0 0
        %656 = vmatpush1.bf16.msra.mxu0 %v636
        %657 = vmatprep.subr.bf16.mxu0 0
        %658 = vmatpush1.bf16.msra.mxu0 %v637
        %659 = vmatprep.subr.bf16.mxu0 0
        %660 = vmatpush1.bf16.msra.mxu0 %v638
        %661 = vmatprep.subr.bf16.mxu0 0
        %662 = vmatpush1.bf16.msra.mxu0 %v639
        %663 = vmatprep.subr.bf16.mxu0 0
        %664 = vmatpush1.bf16.msra.mxu0 %v640
        %665 = vmatprep.subr.bf16.mxu0 0
        %666 = vmatpush1.bf16.msra.mxu0 0
        %667 = vmatprep.subr.bf16.mxu0 0
        %668 = vmatpush1.bf16.msra.mxu0 0
        %669 = vmatprep.subr.bf16.mxu0 0
        %670 = vmatpush1.bf16.msra.mxu0 0
        %671 = vmatprep.subr.bf16.mxu0 0
        %672 = vmatpush1.bf16.msra.mxu0 0
        %673 = vmatprep.subr.bf16.mxu0 0
        %674 = vmatpush1.bf16.msra.mxu0 0
        %675 = vmatprep.subr.bf16.mxu0 0
        %676 = vmatpush1.bf16.msra.mxu0 0
        %677 = vmatprep.subr.bf16.mxu0 0
        %678 = vmatpush1.bf16.msra.mxu0 0
        %679 = vmatprep.subr.bf16.mxu0 0
        %680 = vmatpush1.bf16.msra.mxu0 0
        %681 = vmatprep.mubr.bf16.mxu0 0
        %682 = vmatmul.mubr.bf16.gmra.mrb[0].mxu0 %v575
        %v683 = vpop.f32.mrb[0].mxu0
        %v684 = vadd.f32 %v599, %v683
        %v685 = vpop.f32.mrb[0].mxu0
        %v686 = vpop.f32.mrb[0].mxu0
        %v687 = vpop.f32.mrb[0].mxu0
        %688 = vdwg.mxu0
        %v689 = vmax.f32 %v684, 0.0
        %v690 = vpack.c.bf16 %v689, %v689
        %v691 = vld [vmem:[#allocation8] sm:$0xf]
        %v692 = vld [vmem:[#allocation8 + $0x4] sm:$0xf]
        %v693 = vld [vmem:[#allocation8 + $0x8] sm:$0xf]
        %v694 = vld [vmem:[#allocation8 + $0xc] sm:$0xf]
        %v695 = vld [vmem:[#allocation8 + $0x10] sm:$0xf]
        %v696 = vld [vmem:[#allocation8 + $0x14] sm:$0xf]
        %v697 = vld [vmem:[#allocation8 + $0x18] sm:$0xf]
        %v698 = vld [vmem:[#allocation8 + $0x1c] sm:$0xf]
        %v699 = vld [vmem:[#allocation8 + $0x20] sm:$0xf]
        %v700 = vld [vmem:[#allocation8 + $0x24] sm:$0xf]
        %v701 = vld [vmem:[#allocation8 + $0x28] sm:$0xf]
        %v702 = vld [vmem:[#allocation8 + $0x2c] sm:$0xf]
        %v703 = vld [vmem:[#allocation8 + $0x30] sm:$0xf]
        %v704 = vld [vmem:[#allocation8 + $0x34] sm:$0xf]
        %v705 = vld [vmem:[#allocation8 + $0x38] sm:$0xf]
        %v706 = vld [vmem:[#allocation8 + $0x3c] sm:$0xf]
        %v723 = vunpack.c.l.b16 %v691
        %v724 = vunpack.c.l.b16 %v692
        %v725 = vunpack.c.l.b16 %v693
        %v726 = vunpack.c.l.b16 %v694
        %v727 = vunpack.c.l.b16 %v695
        %v728 = vunpack.c.l.b16 %v696
        %v729 = vunpack.c.l.b16 %v697
        %v730 = vunpack.c.l.b16 %v698
        %v731 = vunpack.c.l.b16 %v699
        %v732 = vunpack.c.l.b16 %v700
        %v733 = vunpack.c.l.b16 %v701
        %v734 = vunpack.c.l.b16 %v702
        %v735 = vunpack.c.l.b16 %v703
        %v736 = vunpack.c.l.b16 %v704
        %v737 = vunpack.c.l.b16 %v705
        %v738 = vunpack.c.l.b16 %v706
        %v739 = vpack.c.b16 %v724, %v723
        %v740 = vpack.c.b16 %v726, %v725
        %v741 = vpack.c.b16 %v728, %v727
        %v742 = vpack.c.b16 %v730, %v729
        %v743 = vpack.c.b16 %v732, %v731
        %v744 = vpack.c.b16 %v734, %v733
        %v745 = vpack.c.b16 %v736, %v735
        %v746 = vpack.c.b16 %v738, %v737
        %755 = vmatprep.subr.bf16.mxu0 0
        %756 = vmatpush1.bf16.msra.mxu0 %v739
        %757 = vmatprep.subr.bf16.mxu0 0
        %758 = vmatpush1.bf16.msra.mxu0 %v740
        %759 = vmatprep.subr.bf16.mxu0 0
        %760 = vmatpush1.bf16.msra.mxu0 %v741
        %761 = vmatprep.subr.bf16.mxu0 0
        %762 = vmatpush1.bf16.msra.mxu0 %v742
        %763 = vmatprep.subr.bf16.mxu0 0
        %764 = vmatpush1.bf16.msra.mxu0 %v743
        %765 = vmatprep.subr.bf16.mxu0 0
        %766 = vmatpush1.bf16.msra.mxu0 %v744
        %767 = vmatprep.subr.bf16.mxu0 0
        %768 = vmatpush1.bf16.msra.mxu0 %v745
        %769 = vmatprep.subr.bf16.mxu0 0
        %770 = vmatpush1.bf16.msra.mxu0 %v746
        %771 = vmatprep.subr.bf16.mxu0 0
        %772 = vmatpush1.bf16.msra.mxu0 0
        %773 = vmatprep.subr.bf16.mxu0 0
        %774 = vmatpush1.bf16.msra.mxu0 0
        %775 = vmatprep.subr.bf16.mxu0 0
        %776 = vmatpush1.bf16.msra.mxu0 0
        %777 = vmatprep.subr.bf16.mxu0 0
        %778 = vmatpush1.bf16.msra.mxu0 0
        %779 = vmatprep.subr.bf16.mxu0 0
        %780 = vmatpush1.bf16.msra.mxu0 0
        %781 = vmatprep.subr.bf16.mxu0 0
        %782 = vmatpush1.bf16.msra.mxu0 0
        %783 = vmatprep.subr.bf16.mxu0 0
        %784 = vmatpush1.bf16.msra.mxu0 0
        %785 = vmatprep.subr.bf16.mxu0 0
        %786 = vmatpush1.bf16.msra.mxu0 0
        %787 = vmatprep.mubr.bf16.mxu0 0
        %788 = vmatmul.mubr.bf16.gmra.mrb[0].mxu0 %v690
        %v789 = vpop.f32.mrb[0].mxu0
        %v790 = vadd.f32 0.0, %v789
        %v791 = vpop.f32.mrb[0].mxu0
        %v792 = vpop.f32.mrb[0].mxu0
        %v793 = vpop.f32.mrb[0].mxu0
        %794 = vdwg.mxu0
        %v795 = vmul.f32 %v790, %v790
        %796 = vadd.xlane.f32.xlu0 %v795
        %v797 = vpop.xlane.xlu0 %796
        %v798 = vmax.f32 %v797, 1e-24
        %v799 = vrsqrt.pop %v798
        %v800 = vmul.f32 %v790, %v799
        %vm801 = vcmask 64512
        %802 = vst.msk [vmem:[%s351] sm:$0xff] %vm801, %v800
        %p803 = scmp.lt.s32.totalorder %s27, 1
        %s804 = scalar_select %p803, %s27, 1
        %s805 = smul.addr %s804, 8
        %s806 = scalar_lea.vmem %s6, %s805
        %s807 = sand.u32 %s192, 1
        %s808 = scalar_lea.sflag [#allocation4], %s807
        %s809 = sand.u32 %s192, 1
        %s810 = smul.addr %s809, 4
        %s811 = scalar_lea.vmem [#allocation10], %s810
        // Predicated region
        $region61: #{tpu_custom_call.1} parent=43 // pred_check
          %p812 = pneg %p176
        $region62: #{tpu_custom_call.1} parent=43 // pred_check_branch
          %814 = sbr.rel (%p812) target = $region64
        $region63: #{tpu_custom_call.1} parent=43 // pred_region
          _
        $region64: #{tpu_custom_call.1} parent=43 // pred_fallthru
          _
        // Predicated region
        $region65: #{tpu_custom_call.1} parent=43 // pred_check
          %p815 = pneg %p202
        $region66: #{tpu_custom_call.1} parent=43 // pred_check_branch
          %817 = sbr.rel (%p815) target = $region68
        $region67: #{tpu_custom_call.1} parent=43 // pred_region
          %s819 = ssub.s32 64, 64
          %820 = vsyncadd %s808, %s819
          %s821 = smul.addr %s27, 64
          %s822 = scalar_lea.hbm %s7, %s821
          %s824 = sshll.u32 %s811, 4
          %s825 = int_to_ptr.vmem [resolvable:$true] %s824
          %827 = dma.vmem_to_hbm [thread:$0]  %s825, 64, %s822, %s808
        $region68: #{tpu_custom_call.1} parent=43 // pred_fallthru
          _
      $region44: #{tpu_custom_call.1} parent=5 // pred_fallthru
        _
      %p828 = scmp.le.s32.totalorder 2, %s22
      // Predicated region
      $region69: #{tpu_custom_call.1} parent=5 // pred_check
        %p829 = pneg %p828
      $region70: #{tpu_custom_call.1} parent=5 // pred_check_branch
        %831 = sbr.rel (%p829) target = $region72
      $region71: #{tpu_custom_call.1} parent=5 // pred_region
        %s832 = ssub.s32 %s22, 2
        // Predicated region
        $region73: #{tpu_custom_call.1} parent=71 // pred_check
          %p833 = pneg %p182
        $region74: #{tpu_custom_call.1} parent=71 // pred_check_branch
          %835 = sbr.rel (%p833) target = $region76
        $region75: #{tpu_custom_call.1} parent=71 // pred_region
          %p836 = scmp.lt.s32.totalorder %s28, 1
          %s837 = scalar_select %p836, %s28, 1
          %s838 = smul.addr %s837, 8
          %s839 = scalar_lea.vmem %s6, %s838
        $region76: #{tpu_custom_call.1} parent=71 // pred_fallthru
          _
        // Predicated region
        $region77: #{tpu_custom_call.1} parent=71 // pred_check
          %p840 = pneg %p208
        $region78: #{tpu_custom_call.1} parent=71 // pred_check_branch
          %842 = sbr.rel (%p840) target = $region80
        $region79: #{tpu_custom_call.1} parent=71 // pred_region
          %s843 = sand.u32 %s193, 1
          %s844 = scalar_lea.sflag [#allocation4], %s843
          %s845 = sand.u32 %s193, 1
          %s846 = smul.addr %s845, 4
          %s847 = scalar_lea.vmem [#allocation10], %s846
          %848 = dma.done %s844, 64
        $region80: #{tpu_custom_call.1} parent=71 // pred_fallthru
          _
      $region72: #{tpu_custom_call.1} parent=5 // pred_fallthru
        _
    $region6: #{tpu_custom_call.1} parent=1 // loop_footer
      %s26 = sadd.s32 1, %s22
    $region7: #{tpu_custom_call.1} parent=1 // loop_footer_branch
      %21 = sbr.rel target = $region3
    $region8: #{tpu_custom_call.1} parent=1 // loop_exit
      _
    %849 = vsyncpa [#allocation3], 1
    %s850 = scalar_lea.sflag [#allocation3], 1
    %851 = vsyncpa %s850, 1
    %852 = vsyncpa [#allocation6], 1
    %853 = vsyncpa [#allocation9], 1
    %854 = vsyncpa [#allocation4], 1
    %s855 = scalar_lea.sflag [#allocation4], 1
    %856 = vsyncpa %s855, 1

</llo_original>
